<compile_context>
chip_gen: v5e
topology: v5e:2x2
jax: 0.10.0
libtpu: 0.0.40
codegen_flags: <defaults>
</compile_context>

<pallas_src>
import jax
import jax.numpy as jnp
from jax import lax
from jax.experimental import pallas as pl
from jax.experimental.pallas import tpu as pltpu


def _round_up(x, m):
    return (x + m - 1) // m * m


def rubi_kernel(logits_ref, q_ref, w1_ref, b1_ref, wcat_ref, bcat_ref,
                fusion_ref, qout_ref, h_ref):
    # Compute h once per batch tile (o == 0), reuse across all O-column tiles.
    @pl.when(pl.program_id(1) == 0)
    def _():
        h = jnp.dot(q_ref[...].astype(w1_ref.dtype), w1_ref[...],
                    preferred_element_type=jnp.float32)
        h = jnp.maximum(h + b1_ref[...], 0.0)          # b1 is f32
        h_ref[...] = h.astype(h_ref.dtype)

    to = fusion_ref.shape[-1]
    # Single weight-stationary pass: columns [0:to) are W2, [to:2to) are W2@W3.
    z = (jnp.dot(h_ref[...], wcat_ref[...], preferred_element_type=jnp.float32)
         + bcat_ref[...])                              # bcat is f32
    q_pred = z[:, :to]
    q_out = z[:, to:]

    # fusion = logits * sigmoid(q_pred)   (sigmoid -> EUP, mul -> VPU)
    fusion_ref[...] = (logits_ref[...].astype(jnp.float32)
                       * jax.nn.sigmoid(q_pred)).astype(fusion_ref.dtype)
    qout_ref[...] = q_out.astype(qout_ref.dtype)


def prepare_rubi_params(params, *, col_tile=512, weight_dtype=None):
    """One-time weight prep: fold c_2 into c_1's 2nd layer (f32), pad all
    feature dims to lane-dense multiples of 128, and interleave W2 / (W2@W3)
    per output-column tile.  Call once and reuse across forward calls."""
    w1, b1, w2, b2, w3, b3 = params
    f32 = jnp.float32
    b1, b2, b3 = (jnp.asarray(b).reshape(1, -1) for b in (b1, b2, b3))
    Q, H = w1.shape
    O = w2.shape[1]
    wdt = jnp.dtype(weight_dtype or w1.dtype)

    # Fold:  (h@W2 + b2) @ W3 + b3  ==  h @ (W2@W3) + (b2@W3 + b3)   (in f32)
    w23 = jnp.dot(w2.astype(f32), w3.astype(f32))
    b23 = jnp.dot(b2.astype(f32), w3.astype(f32)) + b3.astype(f32)

    Qp, Hp = _round_up(Q, 128), _round_up(H, 128)
    to = min(col_tile, _round_up(O, 128))      # multiple of 128
    Op = _round_up(O, to)
    nO = Op // to

    pad2 = lambda a, r, c: jnp.pad(a, ((0, r - a.shape[0]), (0, c - a.shape[1])))
    w1p = pad2(w1, Qp, Hp).astype(wdt)
    b1p = pad2(b1.astype(f32), 1, Hp)                       # bias kept f32
    w2p = pad2(w2.astype(f32), Hp, Op)
    w23p = pad2(w23, Hp, Op)
    # Interleave per O tile: column block o holds [W2[:, tile o] | W23[:, tile o]]
    wcat = jnp.concatenate([w2p.reshape(Hp, nO, to),
                            w23p.reshape(Hp, nO, to)], axis=-1)
    wcat = wcat.reshape(Hp, 2 * Op).astype(wdt)
    b2p = pad2(b2.astype(f32), 1, Op)
    b23p = pad2(b23, 1, Op)
    bcat = jnp.concatenate([b2p.reshape(1, nO, to),
                            b23p.reshape(1, nO, to)], axis=-1).reshape(1, 2 * Op)

    return {"w1": w1p, "b1": b1p, "wcat": wcat, "bcat": bcat,
            "dims": (Q, H, O), "padded": (Qp, Hp, Op), "col_tile": to}


def rubi_forward(logits, q_emb, prep, *, tb=256):
    """logits: [B, O], q_emb: [B, Q], prep: prepare_rubi_params(...) output."""
    B, O = logits.shape
    Q = q_emb.shape[1]
    Qp, Hp, Op = prep["padded"]
    to = prep["col_tile"]
    nO = Op // to
    assert (Q, O) == (prep["dims"][0], prep["dims"][2])

    w1p, b1p, wcat, bcat = prep["w1"], prep["b1"], prep["wcat"], prep["bcat"]
    wdt = w1p.dtype
    adt = logits.dtype
    abytes = jnp.dtype(adt).itemsize
    wbytes = jnp.dtype(wdt).itemsize

    # grad_mul_const(q_emb, 0.0): identity in forward, zero gradient backward.
    q_emb = lax.stop_gradient(q_emb)

    sub = 8 if abytes >= 4 else 16
    tb = _round_up(max(sub, min(tb, _round_up(B, sub))), sub)
    # Megacore: avoid a 1-step "parallel" batch axis when B allows >= 2 tiles.
    if B > sub and _round_up(B, sub) <= tb:
        tb = max(sub, _round_up(_round_up(B, sub) // 2, sub))
    Bp = _round_up(B, tb)

    pad2 = lambda a, r, c: jnp.pad(a, ((0, r - a.shape[0]), (0, c - a.shape[1])))
    logits_p = pad2(logits, Bp, Op)
    q_p = pad2(q_emb, Bp, Qp)

    # VMEM budget: resident weights (worst-case 2 bufs) + double-buffered tiles
    # + h scratch + f32 intermediates + slack; clamped to physical VMEM.
    est = (2 * (Qp * Hp * wbytes + Hp * 4)
           + 2 * (Hp * 2 * to * wbytes + 2 * to * 4)
           + 2 * tb * (Qp + to) * abytes
           + 2 * 2 * tb * to * abytes
           + tb * Hp * wbytes
           + tb * (Hp + 2 * to) * 4
           + (4 << 20))
    try:
        phys = int(pltpu.get_tpu_info().vmem_capacity_bytes)
    except Exception:
        phys = 64 << 20
    vmem_limit = int(max(16 << 20, min(max(est, 32 << 20), phys - (4 << 20))))

    cost = pl.CostEstimate(
        flops=2 * Bp * (Qp * Hp + Hp * 2 * Op),
        transcendentals=Bp * Op,
        bytes_accessed=int(logits_p.size * abytes + q_p.size * abytes
                           + w1p.size * wbytes + wcat.size * wbytes
                           + (b1p.size + bcat.size) * 4 + 2 * Bp * Op * abytes))

    def run(weight_mode):
        res_kw = {} if weight_mode is None else {"pipeline_mode": weight_mode}
        grid_spec = pltpu.PrefetchScalarGridSpec(
            num_scalar_prefetch=0,
            grid=(Bp // tb, nO),
            in_specs=[
                pl.BlockSpec((tb, to), lambda i, o: (i, o)),            # logits
                pl.BlockSpec((tb, Qp), lambda i, o: (i, 0)),            # q_emb
                pl.BlockSpec((Qp, Hp), lambda i, o: (0, 0), **res_kw),  # W1 (resident)
                pl.BlockSpec((1, Hp), lambda i, o: (0, 0), **res_kw),   # b1 (resident)
                pl.BlockSpec((Hp, 2 * to), lambda i, o: (0, o)),        # [W2 | W2@W3] col tile
                pl.BlockSpec((1, 2 * to), lambda i, o: (0, o)),         # [b2 | b2@W3+b3]
            ],
            out_specs=[pl.BlockSpec((tb, to), lambda i, o: (i, o)),     # fusion
                       pl.BlockSpec((tb, to), lambda i, o: (i, o))],    # q_out
            scratch_shapes=[pltpu.VMEM((tb, Hp), wdt)],                 # h, reused over o
        )
        return pl.pallas_call(
            rubi_kernel,
            out_shape=(jax.ShapeDtypeStruct((Bp, Op), adt),
                       jax.ShapeDtypeStruct((Bp, Op), adt)),
            grid_spec=grid_spec,
            compiler_params=pltpu.CompilerParams(
                dimension_semantics=("parallel", "arbitrary"),
                vmem_limit_bytes=vmem_limit),
            cost_estimate=cost,
        )(logits_p, q_p, w1p, b1p, wcat, bcat)

    try:
        fusion, q_out = run(pl.Buffered(1))   # single-buffer resident W1 / b1
    except Exception:
        # TODO(synk): remove fallback once Buffered(1) on constant-index inputs
        # is guaranteed supported by the deployed jax version.
        fusion, q_out = run(None)

    return {"logits": logits,
            "logits_all": fusion[:B, :O],
            "logits_q": q_out[:B, :O]}


def init_params(key, q_dim, hidden, output_size, dtype=jnp.float32):
    ks = jax.random.split(key, 6)
    scale = 0.05
    w1 = (scale * jax.random.normal(ks[0], (q_dim, hidden), jnp.float32)).astype(dtype)
    b1 = (scale * jax.random.normal(ks[1], (1, hidden), jnp.float32)).astype(dtype)
    w2 = (scale * jax.random.normal(ks[2], (hidden, output_size), jnp.float32)).astype(dtype)
    b2 = (scale * jax.random.normal(ks[3], (1, output_size), jnp.float32)).astype(dtype)
    w3 = (scale * jax.random.normal(ks[4], (output_size, output_size), jnp.float32)).astype(dtype)
    b3 = (scale * jax.random.normal(ks[5], (1, output_size), jnp.float32)).astype(dtype)
    return (w1, b1, w2, b2, w3, b3)


def rubi_reference(logits, q_emb, params):
    w1, b1, w2, b2, w3, b3 = params
    h = jnp.maximum(q_emb @ w1 + b1, 0.0)
    q_pred = h @ w2 + b2
    return {"logits": logits,
            "logits_all": logits * jax.nn.sigmoid(q_pred),
            "logits_q": q_pred @ w3 + b3}


if __name__ == "__main__":
    B, Q_DIM, HIDDEN, OUTPUT_SIZE = 8, 32, 32, 32

    key = jax.random.PRNGKey(0)
    k_logits, k_q, k_params = jax.random.split(key, 3)
    logits = jax.random.normal(k_logits, (B, OUTPUT_SIZE), jnp.float32)
    q_emb = jax.random.normal(k_q, (B, Q_DIM), jnp.float32)
    params = init_params(k_params, Q_DIM, HIDDEN, OUTPUT_SIZE)

    prep = prepare_rubi_params(params)          # one-time fold / pad / interleave
    out = rubi_forward(logits, q_emb, prep)
    jax.block_until_ready(out)

    ref = rubi_reference(logits, q_emb, params)
    # logits/logits_all are exact modulo MXU accumulation order; logits_q has a
    # tiny extra rounding difference from the f32 W2@W3 fold.
    for k in ("logits", "logits_all", "logits_q"):
        assert jnp.allclose(out[k], ref[k], atol=1e-4, rtol=1e-4), k

    print("KERNEL_OK")
</pallas_src>

<mosaic_0001>
module attributes {stable_mosaic.version = 11 : i64} {
  func.func @rubi_kernel(%arg0: i32, %arg1: i32, %arg2: memref<8x128xf32, #tpu.memory_space<vmem>>, %arg3: memref<8x128xf32, #tpu.memory_space<vmem>>, %arg4: memref<128x128xf32, #tpu.memory_space<vmem>>, %arg5: memref<1x128xf32, #tpu.memory_space<vmem>>, %arg6: memref<128x256xf32, #tpu.memory_space<vmem>>, %arg7: memref<1x256xf32, #tpu.memory_space<vmem>>, %arg8: memref<8x128xf32, #tpu.memory_space<vmem>>, %arg9: memref<8x128xf32, #tpu.memory_space<vmem>>, %arg10: memref<8x128xf32, #tpu.memory_space<vmem>>) attributes {dimension_semantics = [#tpu.dimension_semantics<parallel>, #tpu.dimension_semantics<arbitrary>], iteration_bounds = array<i64: 1, 1>, scalar_prefetch = 0 : i64, scratch_operands = 1 : i64, tpu.core_type = #tpu.core_type<tc>, window_params = [{transform_indices = @transform_0, window_bounds = array<i64: 8, 128>}, {transform_indices = @transform_1, window_bounds = array<i64: 8, 128>}, {pipeline_mode = #tpu.pipeline_mode<synchronous>, transform_indices = @transform_2, window_bounds = array<i64: 128, 128>}, {pipeline_mode = #tpu.pipeline_mode<synchronous>, transform_indices = @transform_3, window_bounds = array<i64: 1, 128>}, {transform_indices = @transform_4, window_bounds = array<i64: 128, 256>}, {transform_indices = @transform_5, window_bounds = array<i64: 1, 256>}, {transform_indices = @transform_6, window_bounds = array<i64: 8, 128>}, {transform_indices = @transform_7, window_bounds = array<i64: 8, 128>}]} {
    %c0_i32 = arith.constant 0 : i32
    %0 = arith.cmpi eq, %arg1, %c0_i32 : i32
    %1 = arith.extui %0 : i1 to i32
    %c0_i32_0 = arith.constant 0 : i32
    %2 = arith.cmpi ne, %1, %c0_i32_0 : i32
    scf.if %2 {
      %c0_13 = arith.constant 0 : index
      %c0_14 = arith.constant 0 : index
      %20 = vector.load %arg3[%c0_13, %c0_14] : memref<8x128xf32, #tpu.memory_space<vmem>>, vector<8x128xf32>
      %c0_15 = arith.constant 0 : index
      %c0_16 = arith.constant 0 : index
      %21 = vector.load %arg4[%c0_15, %c0_16] : memref<128x128xf32, #tpu.memory_space<vmem>>, vector<128x128xf32>
      %cst_17 = arith.constant dense<0.000000e+00> : vector<8x128xf32>
      %22 = tpu.matmul %20, %21, %cst_17 {dimension_numbers = #tpu.dot_dimension_numbers<[1], [0], [0], [1], [0, 0, 1, 1], [], []>} : vector<8x128xf32>, vector<128x128xf32>, vector<8x128xf32> -> vector<8x128xf32>
      %c0_18 = arith.constant 0 : index
      %c0_19 = arith.constant 0 : index
      %23 = vector.load %arg5[%c0_18, %c0_19] : memref<1x128xf32, #tpu.memory_space<vmem>>, vector<1x128xf32>
      %24 = vector.broadcast %23 : vector<1x128xf32> to vector<8x128xf32>
      %25 = arith.addf %22, %24 : vector<8x128xf32>
      %cst_20 = arith.constant 0.000000e+00 : f32
      %26 = vector.broadcast %cst_20 : f32 to vector<8x128xf32>
      %27 = arith.maximumf %25, %26 : vector<8x128xf32>
      %c0_21 = arith.constant 0 : index
      %c0_22 = arith.constant 0 : index
      %28 = vector.load %arg10[%c0_21, %c0_22] : memref<8x128xf32, #tpu.memory_space<vmem>>, vector<8x128xf32>
      tpu.vector_store %arg10[%c0_21, %c0_22], %27 {strides = array<i32>} : memref<8x128xf32, #tpu.memory_space<vmem>>, vector<8x128xf32>,
    } else {
    }
    %c0 = arith.constant 0 : index
    %c0_1 = arith.constant 0 : index
    %3 = vector.load %arg10[%c0, %c0_1] : memref<8x128xf32, #tpu.memory_space<vmem>>, vector<8x128xf32>
    %c0_2 = arith.constant 0 : index
    %c0_3 = arith.constant 0 : index
    %4 = vector.load %arg6[%c0_2, %c0_3] : memref<128x256xf32, #tpu.memory_space<vmem>>, vector<128x256xf32>
    %cst = arith.constant dense<0.000000e+00> : vector<8x256xf32>
    %5 = tpu.matmul %3, %4, %cst {dimension_numbers = #tpu.dot_dimension_numbers<[1], [0], [0], [1], [0, 0, 1, 1], [], []>} : vector<8x128xf32>, vector<128x256xf32>, vector<8x256xf32> -> vector<8x256xf32>
    %c0_4 = arith.constant 0 : index
    %c0_5 = arith.constant 0 : index
    %6 = vector.load %arg7[%c0_4, %c0_5] : memref<1x256xf32, #tpu.memory_space<vmem>>, vector<1x256xf32>
    %7 = vector.broadcast %6 : vector<1x256xf32> to vector<8x256xf32>
    %8 = arith.addf %5, %7 : vector<8x256xf32>
    %9 = vector.extract_strided_slice %8 {offsets = [0, 0], sizes = [8, 128], strides = [1, 1]} : vector<8x256xf32> to vector<8x128xf32>
    %10 = vector.extract_strided_slice %8 {offsets = [0, 128], sizes = [8, 128], strides = [1, 1]} : vector<8x256xf32> to vector<8x128xf32>
    %c0_6 = arith.constant 0 : index
    %c0_7 = arith.constant 0 : index
    %11 = vector.load %arg2[%c0_6, %c0_7] : memref<8x128xf32, #tpu.memory_space<vmem>>, vector<8x128xf32>
    %12 = arith.negf %9 : vector<8x128xf32>
    %13 = math.exp %12 : vector<8x128xf32>
    %cst_8 = arith.constant 1.000000e+00 : f32
    %14 = vector.broadcast %cst_8 : f32 to vector<8x128xf32>
    %15 = arith.addf %14, %13 : vector<8x128xf32>
    %16 = arith.divf %14, %15 : vector<8x128xf32>
    %17 = arith.mulf %11, %16 : vector<8x128xf32>
    %c0_9 = arith.constant 0 : index
    %c0_10 = arith.constant 0 : index
    %18 = vector.load %arg8[%c0_9, %c0_10] : memref<8x128xf32, #tpu.memory_space<vmem>>, vector<8x128xf32>
    tpu.vector_store %arg8[%c0_9, %c0_10], %17 {strides = array<i32>} : memref<8x128xf32, #tpu.memory_space<vmem>>, vector<8x128xf32>,
    %c0_11 = arith.constant 0 : index
    %c0_12 = arith.constant 0 : index
    %19 = vector.load %arg9[%c0_11, %c0_12] : memref<8x128xf32, #tpu.memory_space<vmem>>, vector<8x128xf32>
    tpu.vector_store %arg9[%c0_11, %c0_12], %10 {strides = array<i32>} : memref<8x128xf32, #tpu.memory_space<vmem>>, vector<8x128xf32>,
    return
  }
  func.func @transform_0(%arg0: i32, %arg1: i32) -> (i32, i32) {
    %c0_i32 = arith.constant 0 : i32
    return %arg0, %arg1 : i32, i32
  }
  func.func @transform_1(%arg0: i32, %arg1: i32) -> (i32, i32) {
    %c0_i32 = arith.constant 0 : i32
    %c0_i32_0 = arith.constant 0 : i32
    return %arg0, %c0_i32 : i32, i32
  }
  func.func @transform_2(%arg0: i32, %arg1: i32) -> (i32, i32) {
    %c0_i32 = arith.constant 0 : i32
    %c0_i32_0 = arith.constant 0 : i32
    %c0_i32_1 = arith.constant 0 : i32
    return %c0_i32, %c0_i32_0 : i32, i32
  }
  func.func @transform_3(%arg0: i32, %arg1: i32) -> (i32, i32) {
    %c0_i32 = arith.constant 0 : i32
    %c0_i32_0 = arith.constant 0 : i32
    %c0_i32_1 = arith.constant 0 : i32
    return %c0_i32, %c0_i32_0 : i32, i32
  }
  func.func @transform_4(%arg0: i32, %arg1: i32) -> (i32, i32) {
    %c0_i32 = arith.constant 0 : i32
    %c0_i32_0 = arith.constant 0 : i32
    return %c0_i32, %arg1 : i32, i32
  }
  func.func @transform_5(%arg0: i32, %arg1: i32) -> (i32, i32) {
    %c0_i32 = arith.constant 0 : i32
    %c0_i32_0 = arith.constant 0 : i32
    return %c0_i32, %arg1 : i32, i32
  }
  func.func @transform_6(%arg0: i32, %arg1: i32) -> (i32, i32) {
    %c0_i32 = arith.constant 0 : i32
    return %arg0, %arg1 : i32, i32
  }
  func.func @transform_7(%arg0: i32, %arg1: i32) -> (i32, i32) {
    %c0_i32 = arith.constant 0 : i32
    return %arg0, %arg1 : i32, i32
  }
}

module attributes {stable_mosaic.version = 11 : i64} {
  func.func @rubi_kernel(%arg0: i32, %arg1: i32, %arg2: memref<8x128xf32, #tpu.memory_space<vmem>>, %arg3: memref<8x128xf32, #tpu.memory_space<vmem>>, %arg4: memref<128x128xf32, #tpu.memory_space<vmem>>, %arg5: memref<1x128xf32, #tpu.memory_space<vmem>>, %arg6: memref<128x256xf32, #tpu.memory_space<vmem>>, %arg7: memref<1x256xf32, #tpu.memory_space<vmem>>, %arg8: memref<8x128xf32, #tpu.memory_space<vmem>>, %arg9: memref<8x128xf32, #tpu.memory_space<vmem>>, %arg10: memref<8x128xf32, #tpu.memory_space<vmem>>) attributes {dimension_semantics = [#tpu.dimension_semantics<parallel>, #tpu.dimension_semantics<arbitrary>], iteration_bounds = array<i64: 1, 1>, scalar_prefetch = 0 : i64, scratch_operands = 1 : i64, tpu.core_type = #tpu.core_type<tc>, window_params = [{transform_indices = @transform_0, window_bounds = array<i64: 8, 128>}, {transform_indices = @transform_1, window_bounds = array<i64: 8, 128>}, {pipeline_mode = #tpu.pipeline_mode<synchronous>, transform_indices = @transform_2, window_bounds = array<i64: 128, 128>}, {pipeline_mode = #tpu.pipeline_mode<synchronous>, transform_indices = @transform_3, window_bounds = array<i64: 1, 128>}, {transform_indices = @transform_4, window_bounds = array<i64: 128, 256>}, {transform_indices = @transform_5, window_bounds = array<i64: 1, 256>}, {transform_indices = @transform_6, window_bounds = array<i64: 8, 128>}, {transform_indices = @transform_7, window_bounds = array<i64: 8, 128>}]} {
    %c0_i32 = arith.constant 0 : i32
    %0 = arith.cmpi eq, %arg1, %c0_i32 : i32
    %1 = arith.extui %0 : i1 to i32
    %c0_i32_0 = arith.constant 0 : i32
    %2 = arith.cmpi ne, %1, %c0_i32_0 : i32
    scf.if %2 {
      %c0_13 = arith.constant 0 : index
      %c0_14 = arith.constant 0 : index
      %20 = vector.load %arg3[%c0_13, %c0_14] : memref<8x128xf32, #tpu.memory_space<vmem>>, vector<8x128xf32>
      %c0_15 = arith.constant 0 : index
      %c0_16 = arith.constant 0 : index
      %21 = vector.load %arg4[%c0_15, %c0_16] : memref<128x128xf32, #tpu.memory_space<vmem>>, vector<128x128xf32>
      %cst_17 = arith.constant dense<0.000000e+00> : vector<8x128xf32>
      %22 = tpu.matmul %20, %21, %cst_17 {dimension_numbers = #tpu.dot_dimension_numbers<[1], [0], [0], [1], [0, 0, 1, 1], [], []>} : vector<8x128xf32>, vector<128x128xf32>, vector<8x128xf32> -> vector<8x128xf32>
      %c0_18 = arith.constant 0 : index
      %c0_19 = arith.constant 0 : index
      %23 = vector.load %arg5[%c0_18, %c0_19] : memref<1x128xf32, #tpu.memory_space<vmem>>, vector<1x128xf32>
      %24 = vector.broadcast %23 : vector<1x128xf32> to vector<8x128xf32>
      %25 = arith.addf %22, %24 : vector<8x128xf32>
      %cst_20 = arith.constant 0.000000e+00 : f32
      %26 = vector.broadcast %cst_20 : f32 to vector<8x128xf32>
      %27 = arith.maximumf %25, %26 : vector<8x128xf32>
      %c0_21 = arith.constant 0 : index
      %c0_22 = arith.constant 0 : index
      %28 = vector.load %arg10[%c0_21, %c0_22] : memref<8x128xf32, #tpu.memory_space<vmem>>, vector<8x128xf32>
      tpu.vector_store %arg10[%c0_21, %c0_22], %27 {strides = array<i32>} : memref<8x128xf32, #tpu.memory_space<vmem>>, vector<8x128xf32>,
    } else {
    }
    %c0 = arith.constant 0 : index
    %c0_1 = arith.constant 0 : index
    %3 = vector.load %arg10[%c0, %c0_1] : memref<8x128xf32, #tpu.memory_space<vmem>>, vector<8x128xf32>
    %c0_2 = arith.constant 0 : index
    %c0_3 = arith.constant 0 : index
    %4 = vector.load %arg6[%c0_2, %c0_3] : memref<128x256xf32, #tpu.memory_space<vmem>>, vector<128x256xf32>
    %cst = arith.constant dense<0.000000e+00> : vector<8x256xf32>
    %5 = tpu.matmul %3, %4, %cst {dimension_numbers = #tpu.dot_dimension_numbers<[1], [0], [0], [1], [0, 0, 1, 1], [], []>} : vector<8x128xf32>, vector<128x256xf32>, vector<8x256xf32> -> vector<8x256xf32>
    %c0_4 = arith.constant 0 : index
    %c0_5 = arith.constant 0 : index
    %6 = vector.load %arg7[%c0_4, %c0_5] : memref<1x256xf32, #tpu.memory_space<vmem>>, vector<1x256xf32>
    %7 = vector.broadcast %6 : vector<1x256xf32> to vector<8x256xf32>
    %8 = arith.addf %5, %7 : vector<8x256xf32>
    %9 = vector.extract_strided_slice %8 {offsets = [0, 0], sizes = [8, 128], strides = [1, 1]} : vector<8x256xf32> to vector<8x128xf32>
    %10 = vector.extract_strided_slice %8 {offsets = [0, 128], sizes = [8, 128], strides = [1, 1]} : vector<8x256xf32> to vector<8x128xf32>
    %c0_6 = arith.constant 0 : index
    %c0_7 = arith.constant 0 : index
    %11 = vector.load %arg2[%c0_6, %c0_7] : memref<8x128xf32, #tpu.memory_space<vmem>>, vector<8x128xf32>
    %12 = arith.negf %9 : vector<8x128xf32>
    %13 = math.exp %12 : vector<8x128xf32>
    %cst_8 = arith.constant 1.000000e+00 : f32
    %14 = vector.broadcast %cst_8 : f32 to vector<8x128xf32>
    %15 = arith.addf %14, %13 : vector<8x128xf32>
    %16 = arith.divf %14, %15 : vector<8x128xf32>
    %17 = arith.mulf %11, %16 : vector<8x128xf32>
    %c0_9 = arith.constant 0 : index
    %c0_10 = arith.constant 0 : index
    %18 = vector.load %arg8[%c0_9, %c0_10] : memref<8x128xf32, #tpu.memory_space<vmem>>, vector<8x128xf32>
    tpu.vector_store %arg8[%c0_9, %c0_10], %17 {strides = array<i32>} : memref<8x128xf32, #tpu.memory_space<vmem>>, vector<8x128xf32>,
    %c0_11 = arith.constant 0 : index
    %c0_12 = arith.constant 0 : index
    %19 = vector.load %arg9[%c0_11, %c0_12] : memref<8x128xf32, #tpu.memory_space<vmem>>, vector<8x128xf32>
    tpu.vector_store %arg9[%c0_11, %c0_12], %10 {strides = array<i32>} : memref<8x128xf32, #tpu.memory_space<vmem>>, vector<8x128xf32>,
    return
  }
  func.func @transform_0(%arg0: i32, %arg1: i32) -> (i32, i32) {
    %c0_i32 = arith.constant 0 : i32
    return %arg0, %arg1 : i32, i32
  }
  func.func @transform_1(%arg0: i32, %arg1: i32) -> (i32, i32) {
    %c0_i32 = arith.constant 0 : i32
    %c0_i32_0 = arith.constant 0 : i32
    return %arg0, %c0_i32 : i32, i32
  }
  func.func @transform_2(%arg0: i32, %arg1: i32) -> (i32, i32) {
    %c0_i32 = arith.constant 0 : i32
    %c0_i32_0 = arith.constant 0 : i32
    %c0_i32_1 = arith.constant 0 : i32
    return %c0_i32, %c0_i32_0 : i32, i32
  }
  func.func @transform_3(%arg0: i32, %arg1: i32) -> (i32, i32) {
    %c0_i32 = arith.constant 0 : i32
    %c0_i32_0 = arith.constant 0 : i32
    %c0_i32_1 = arith.constant 0 : i32
    return %c0_i32, %c0_i32_0 : i32, i32
  }
  func.func @transform_4(%arg0: i32, %arg1: i32) -> (i32, i32) {
    %c0_i32 = arith.constant 0 : i32
    %c0_i32_0 = arith.constant 0 : i32
    return %c0_i32, %arg1 : i32, i32
  }
  func.func @transform_5(%arg0: i32, %arg1: i32) -> (i32, i32) {
    %c0_i32 = arith.constant 0 : i32
    %c0_i32_0 = arith.constant 0 : i32
    return %c0_i32, %arg1 : i32, i32
  }
  func.func @transform_6(%arg0: i32, %arg1: i32) -> (i32, i32) {
    %c0_i32 = arith.constant 0 : i32
    return %arg0, %arg1 : i32, i32
  }
  func.func @transform_7(%arg0: i32, %arg1: i32) -> (i32, i32) {
    %c0_i32 = arith.constant 0 : i32
    return %arg0, %arg1 : i32, i32
  }
}

</mosaic_0001>

<llo_original>
// kernel: tpu_custom_call.1
$region0: #{tpu_custom_call.1}
  #allocation0 [shape = 'u32[]', space=smem, size = 0x4, offset = 0x4, fixed_abs, tag = 'smem constant byte address 0x4 - core index']
  #allocation1 [shape = 'u32[72,128]{1,0:T(1,128)}', space=vmem, size = 0x9000, scoped, tag = 'internal scratch']
  #allocation2 [shape = 'f32[8,128]{1,0:T(8,128)}', space=vmem, size = 0x1000, scoped, tag = 'scratch operand']
  %s0 = inlined_call_operand.hbm [shape: f32[8,128], index: 0, kind: input, shape index: {}]
  %s1 = inlined_call_operand.hbm [shape: f32[8,128], index: 1, kind: input, shape index: {}]
  %s2 = inlined_call_operand.hbm [shape: f32[128,128], index: 2, kind: input, shape index: {}]
  %s3 = inlined_call_operand.vmem [shape: f32[1,128], index: 3, kind: input, shape index: {}]
  %s4 = inlined_call_operand.hbm [shape: f32[128,256], index: 4, kind: input, shape index: {}]
  %s5 = inlined_call_operand.vmem [shape: f32[1,256], index: 5, kind: input, shape index: {}]
  %s6 = inlined_call_operand.hbm [shape: f32[8,128], index: 6, kind: output, shape index: {0}]
  %s7 = inlined_call_operand.hbm [shape: f32[8,128], index: 7, kind: output, shape index: {1}]
  %8 = xla_tuple %s6, %s7
  %s9 = sld [smem:[#allocation0]]
  $region62: #{tpu_custom_call.1} parent=0
    _
  %s11 = ssub.s32 1, %s9
  %s12 = scalar_select 0, %s11, %s9
  $region1: #{tpu_custom_call.1} parent=0
    #allocation3 [shape = 'u8[4096]{0}', space=vmem, size = 0x1000, scoped, tag = 'input window, operand 0, single buffered']
    #allocation4 [shape = 's32[1]{0}', space=sflag, size = 0x4, scoped, tag = 'scoped memory for tpu_custom_call.1']
    #allocation5 [shape = 's32[1]{0}', space=sflag, size = 0x4, scoped, tag = 'scoped memory for tpu_custom_call.1']
    #allocation6 [shape = 'u8[4096]{0}', space=vmem, size = 0x1000, scoped, tag = 'input window, operand 1, single buffered']
    #allocation7 [shape = 's32[1]{0}', space=sflag, size = 0x4, scoped, tag = 'scoped memory for tpu_custom_call.1']
    #allocation8 [shape = 'u8[65536]{0}', space=vmem, size = 0x10000, scoped, tag = 'input window, operand 2, single buffered']
    #allocation9 [shape = 'u8[131072]{0}', space=vmem, size = 0x20000, scoped, tag = 'input window, operand 4, single buffered']
    #allocation10 [shape = 's32[1]{0}', space=sflag, size = 0x4, scoped, tag = 'scoped memory for tpu_custom_call.1']
    #allocation11 [shape = 'u8[4096]{0}', space=vmem, size = 0x1000, scoped, tag = 'output window, operand 0, single buffered']
    #allocation12 [shape = 'u8[4096]{0}', space=vmem, size = 0x1000, scoped, tag = 'output window, operand 1, single buffered']
    #allocation13 [shape = 's32[1]{0}', space=sflag, size = 0x4, scoped, tag = 'scoped memory for tpu_custom_call.1']
    %13 = vsyncpa [#allocation4], 0
    %14 = vsyncpa [#allocation7], 0
    %15 = vsyncpa [#allocation10], 0
    %16 = vsyncpa [#allocation5], 0
    %17 = vsyncpa [#allocation13], 0
    // Predicated region
    $region2: #{tpu_custom_call.1} parent=1 // pred_check
      _
    $region3: #{tpu_custom_call.1} parent=1 // pred_check_branch
      %19 = sbr.rel (0) target = $region5
    $region4: #{tpu_custom_call.1} parent=1 // pred_region
      %21 = vsyncadd [#allocation4], 0
      %s23 = sshll.u32 %s0, 4
      %s24 = int_to_ptr.hbm [resolvable:$true] %s23
      %s25 = sshll.u32 [#allocation3], 4
      %s26 = int_to_ptr.vmem [resolvable:$true] %s25
      %28 = dma.hbm_to_vmem [thread:$0]  %s24, 128, %s26, [#allocation4]
    $region5: #{tpu_custom_call.1} parent=1 // pred_fallthru
      _
    // Predicated region
    $region6: #{tpu_custom_call.1} parent=1 // pred_check
      _
    $region7: #{tpu_custom_call.1} parent=1 // pred_check_branch
      %30 = sbr.rel (0) target = $region9
    $region8: #{tpu_custom_call.1} parent=1 // pred_region
      %32 = vsyncadd [#allocation7], 0
      %s34 = sshll.u32 %s1, 4
      %s35 = int_to_ptr.hbm [resolvable:$true] %s34
      %s36 = sshll.u32 [#allocation6], 4
      %s37 = int_to_ptr.vmem [resolvable:$true] %s36
      %39 = dma.hbm_to_vmem [thread:$0]  %s35, 128, %s37, [#allocation7]
    $region9: #{tpu_custom_call.1} parent=1 // pred_fallthru
      _
    // Predicated region
    $region10: #{tpu_custom_call.1} parent=1 // pred_check
      _
    $region11: #{tpu_custom_call.1} parent=1 // pred_check_branch
      %41 = sbr.rel (0) target = $region13
    $region12: #{tpu_custom_call.1} parent=1 // pred_region
      %43 = vsyncadd [#allocation7], 0
      %s44 = sshll.u32 %s2, 4
      %s45 = int_to_ptr.hbm [resolvable:$true] %s44
      %s46 = sshll.u32 [#allocation8], 4
      %s47 = int_to_ptr.vmem [resolvable:$true] %s46
      %52 = dma.hbm_to_vmem [thread:$0]  %s45, 2048, %s47, [#allocation7], 128, 128, 8
    $region13: #{tpu_custom_call.1} parent=1 // pred_fallthru
      _
    // Predicated region
    $region14: #{tpu_custom_call.1} parent=1 // pred_check
      _
    $region15: #{tpu_custom_call.1} parent=1 // pred_check_branch
      %54 = sbr.rel (0) target = $region17
    $region16: #{tpu_custom_call.1} parent=1 // pred_region
      _
    $region17: #{tpu_custom_call.1} parent=1 // pred_fallthru
      _
    // Predicated region
    $region18: #{tpu_custom_call.1} parent=1 // pred_check
      _
    $region19: #{tpu_custom_call.1} parent=1 // pred_check_branch
      %56 = sbr.rel (0) target = $region21
    $region20: #{tpu_custom_call.1} parent=1 // pred_region
      %58 = vsyncadd [#allocation10], 0
      %s59 = sshll.u32 %s4, 4
      %s60 = int_to_ptr.hbm [resolvable:$true] %s59
      %s61 = sshll.u32 [#allocation9], 4
      %s62 = int_to_ptr.vmem [resolvable:$true] %s61
      %67 = dma.hbm_to_vmem [thread:$0]  %s60, 4096, %s62, [#allocation10], 256, 256, 16
    $region21: #{tpu_custom_call.1} parent=1 // pred_fallthru
      _
    // Predicated region
    $region22: #{tpu_custom_call.1} parent=1 // pred_check
      _
    $region23: #{tpu_custom_call.1} parent=1 // pred_check_branch
      %69 = sbr.rel (0) target = $region25
    $region24: #{tpu_custom_call.1} parent=1 // pred_region
      _
    $region25: #{tpu_custom_call.1} parent=1 // pred_fallthru
      _
    // Predicated region
    $region26: #{tpu_custom_call.1} parent=1 // pred_check
      _
    $region27: #{tpu_custom_call.1} parent=1 // pred_check_branch
      %71 = sbr.rel (0) target = $region29
    $region28: #{tpu_custom_call.1} parent=1 // pred_region
      %73 = dma.done [#allocation4], 128
    $region29: #{tpu_custom_call.1} parent=1 // pred_fallthru
      _
    // Predicated region
    $region30: #{tpu_custom_call.1} parent=1 // pred_check
      _
    $region31: #{tpu_custom_call.1} parent=1 // pred_check_branch
      %75 = sbr.rel (0) target = $region33
    $region32: #{tpu_custom_call.1} parent=1 // pred_region
      %77 = dma.done [#allocation7], 128
    $region33: #{tpu_custom_call.1} parent=1 // pred_fallthru
      _
    // Predicated region
    $region34: #{tpu_custom_call.1} parent=1 // pred_check
      _
    $region35: #{tpu_custom_call.1} parent=1 // pred_check_branch
      %79 = sbr.rel (0) target = $region37
    $region36: #{tpu_custom_call.1} parent=1 // pred_region
      %81 = dma.done [#allocation7], 2048
    $region37: #{tpu_custom_call.1} parent=1 // pred_fallthru
      _
    // Predicated region
    $region38: #{tpu_custom_call.1} parent=1 // pred_check
      _
    $region39: #{tpu_custom_call.1} parent=1 // pred_check_branch
      %83 = sbr.rel (0) target = $region41
    $region40: #{tpu_custom_call.1} parent=1 // pred_region
      %85 = dma.done [#allocation10], 4096
    $region41: #{tpu_custom_call.1} parent=1 // pred_fallthru
      _
    %p86 = scmp.eq.s32.totalorder 0, 0
    // Predicated region
    $region42: #{tpu_custom_call.1} parent=1 // pred_check
      %p87 = pneg %p86
    $region43: #{tpu_custom_call.1} parent=1 // pred_check_branch
      %89 = sbr.rel (%p87) target = $region45
    $region44: #{tpu_custom_call.1} parent=1 // pred_region
      %v90 = vld [vmem:[#allocation6] sm:$0xff]
      %v91 = vld [vmem:[#allocation8] sm:$0xff]
      %v92 = vld [vmem:[#allocation8 + $0x8] sm:$0xff]
      %v93 = vld [vmem:[#allocation8 + $0x10] sm:$0xff]
      %v94 = vld [vmem:[#allocation8 + $0x18] sm:$0xff]
      %v95 = vld [vmem:[#allocation8 + $0x20] sm:$0xff]
      %v96 = vld [vmem:[#allocation8 + $0x28] sm:$0xff]
      %v97 = vld [vmem:[#allocation8 + $0x30] sm:$0xff]
      %v98 = vld [vmem:[#allocation8 + $0x38] sm:$0xff]
      %v99 = vld [vmem:[#allocation8 + $0x40] sm:$0xff]
      %v100 = vld [vmem:[#allocation8 + $0x48] sm:$0xff]
      %v101 = vld [vmem:[#allocation8 + $0x50] sm:$0xff]
      %v102 = vld [vmem:[#allocation8 + $0x58] sm:$0xff]
      %v103 = vld [vmem:[#allocation8 + $0x60] sm:$0xff]
      %v104 = vld [vmem:[#allocation8 + $0x68] sm:$0xff]
      %v105 = vld [vmem:[#allocation8 + $0x70] sm:$0xff]
      %v106 = vld [vmem:[#allocation8 + $0x78] sm:$0xff]
      %v107 = vld [vmem:[%s3] sm:$0x1]
      %v109 = vperm.slane %v107, 0
      %111 = vmatpush.msra.mxu0 %v106
      %112 = vmatpush.msra.mxu0 %v105
      %113 = vmatpush.msra.mxu0 %v104
      %114 = vmatpush.msra.mxu0 %v103
      %115 = vmatpush.msra.mxu0 %v102
      %116 = vmatpush.msra.mxu0 %v101
      %117 = vmatpush.msra.mxu0 %v100
      %118 = vmatpush.msra.mxu0 %v99
      %119 = vmatpush.msra.mxu0 %v98
      %120 = vmatpush.msra.mxu0 %v97
      %121 = vmatpush.msra.mxu0 %v96
      %122 = vmatpush.msra.mxu0 %v95
      %123 = vmatpush.msra.mxu0 %v94
      %124 = vmatpush.msra.mxu0 %v93
      %125 = vmatpush.msra.mxu0 %v92
      %126 = vmatpush.msra.mxu0 %v91
      %127 = vmatmul.f32.gmra.mxu0 %v90
      %v128 = vpop.f32.mrf.mxu0
      %v129 = vadd.f32 %v109, %v128
      %130 = vdwg.mxu0
      %v131 = vmax.f32 %v129, 0.0
      %132 = vst [vmem:[#allocation2] sm:$0xff] %v131
    $region45: #{tpu_custom_call.1} parent=1 // pred_fallthru
      _
    %v133 = vld [vmem:[#allocation2] sm:$0xff]
    %v134 = vld [vmem:[#allocation9] sm:$0xff]
    %v135 = vld [vmem:[#allocation9 + $0x8] sm:$0xff]
    %v136 = vld [vmem:[#allocation9 + $0x10] sm:$0xff]
    %v137 = vld [vmem:[#allocation9 + $0x18] sm:$0xff]
    %v138 = vld [vmem:[#allocation9 + $0x20] sm:$0xff]
    %v139 = vld [vmem:[#allocation9 + $0x28] sm:$0xff]
    %v140 = vld [vmem:[#allocation9 + $0x30] sm:$0xff]
    %v141 = vld [vmem:[#allocation9 + $0x38] sm:$0xff]
    %v142 = vld [vmem:[#allocation9 + $0x40] sm:$0xff]
    %v143 = vld [vmem:[#allocation9 + $0x48] sm:$0xff]
    %v144 = vld [vmem:[#allocation9 + $0x50] sm:$0xff]
    %v145 = vld [vmem:[#allocation9 + $0x58] sm:$0xff]
    %v146 = vld [vmem:[#allocation9 + $0x60] sm:$0xff]
    %v147 = vld [vmem:[#allocation9 + $0x68] sm:$0xff]
    %v148 = vld [vmem:[#allocation9 + $0x70] sm:$0xff]
    %v149 = vld [vmem:[#allocation9 + $0x78] sm:$0xff]
    %v150 = vld [vmem:[#allocation9 + $0x80] sm:$0xff]
    %v151 = vld [vmem:[#allocation9 + $0x88] sm:$0xff]
    %v152 = vld [vmem:[#allocation9 + $0x90] sm:$0xff]
    %v153 = vld [vmem:[#allocation9 + $0x98] sm:$0xff]
    %v154 = vld [vmem:[#allocation9 + $0xa0] sm:$0xff]
    %v155 = vld [vmem:[#allocation9 + $0xa8] sm:$0xff]
    %v156 = vld [vmem:[#allocation9 + $0xb0] sm:$0xff]
    %v157 = vld [vmem:[#allocation9 + $0xb8] sm:$0xff]
    %v158 = vld [vmem:[#allocation9 + $0xc0] sm:$0xff]
    %v159 = vld [vmem:[#allocation9 + $0xc8] sm:$0xff]
    %v160 = vld [vmem:[#allocation9 + $0xd0] sm:$0xff]
    %v161 = vld [vmem:[#allocation9 + $0xd8] sm:$0xff]
    %v162 = vld [vmem:[#allocation9 + $0xe0] sm:$0xff]
    %v163 = vld [vmem:[#allocation9 + $0xe8] sm:$0xff]
    %v164 = vld [vmem:[#allocation9 + $0xf0] sm:$0xff]
    %v165 = vld [vmem:[#allocation9 + $0xf8] sm:$0xff]
    %v166 = vld [vmem:[%s5] sm:$0x3]
    %v168 = vperm.slane %v166, 0
    %v169 = vperm.slane %v166, 1
    %172 = vmatpush.msra.mxu0 %v164
    %173 = vmatpush.msra.mxu0 %v162
    %174 = vmatpush.msra.mxu0 %v160
    %175 = vmatpush.msra.mxu0 %v158
    %176 = vmatpush.msra.mxu0 %v156
    %177 = vmatpush.msra.mxu0 %v154
    %178 = vmatpush.msra.mxu0 %v152
    %179 = vmatpush.msra.mxu0 %v150
    %180 = vmatpush.msra.mxu0 %v148
    %181 = vmatpush.msra.mxu0 %v146
    %182 = vmatpush.msra.mxu0 %v144
    %183 = vmatpush.msra.mxu0 %v142
    %184 = vmatpush.msra.mxu0 %v140
    %185 = vmatpush.msra.mxu0 %v138
    %186 = vmatpush.msra.mxu0 %v136
    %187 = vmatpush.msra.mxu0 %v134
    %188 = vmatmul.f32.gmra.mxu0 %v133
    %v189 = vpop.f32.mrf.mxu0
    %v190 = vadd.f32 %v168, %v189
    %191 = vdwg.mxu0
    %192 = vmatpush.msra.mxu0 %v165
    %193 = vmatpush.msra.mxu0 %v163
    %194 = vmatpush.msra.mxu0 %v161
    %195 = vmatpush.msra.mxu0 %v159
    %196 = vmatpush.msra.mxu0 %v157
    %197 = vmatpush.msra.mxu0 %v155
    %198 = vmatpush.msra.mxu0 %v153
    %199 = vmatpush.msra.mxu0 %v151
    %200 = vmatpush.msra.mxu0 %v149
    %201 = vmatpush.msra.mxu0 %v147
    %202 = vmatpush.msra.mxu0 %v145
    %203 = vmatpush.msra.mxu0 %v143
    %204 = vmatpush.msra.mxu0 %v141
    %205 = vmatpush.msra.mxu0 %v139
    %206 = vmatpush.msra.mxu0 %v137
    %207 = vmatpush.msra.mxu0 %v135
    %208 = vmatmul.f32.gmra.mxu0 %v133
    %v209 = vpop.f32.mrf.mxu0
    %v210 = vadd.f32 %v169, %v209
    %211 = vdwg.mxu0
    %v212 = vld [vmem:[#allocation3] sm:$0xff]
    %v213 = vxor.u32 %v190, 2147483648
    %v214 = vmul.f32 %v213, 1.442695
    %v215 = vpow.pop %v214
    %v216 = vadd.f32 %v215, 1.0
    %v217 = vrcp.pop %v216
    %v218 = vmul.f32 %v216, %v217
    %v219 = vsub.f32 1.0, %v218
    %v220 = vmul.f32 %v217, %v219
    %v221 = vadd.f32 %v217, %v220
    %vm222 = vweird.f32 %v216
    %vm223 = vweird.f32 %v217
    %vm224 = vmor %vm222, %vm223
    %v225 = vsel %vm224, %v217, %v221
    %v226 = vand.u32 2147483647, %v216
    %vm227 = vcmp.eq.f32.partialorder %v226, 8.507059e+37
    %v228 = vand.u32 %v216, 2147483648
    %v229 = vor.u32 1.1754944e-38, %v228
    %v230 = vsel %vm227, %v229, %v225
    %v231 = vmul.f32 1.0, %v230
    %v232 = vmul.f32 %v212, %v231
    %233 = vst [vmem:[#allocation11] sm:$0xff] %v232
    %234 = vst [vmem:[#allocation12] sm:$0xff] %v210
    // Predicated region
    $region46: #{tpu_custom_call.1} parent=1 // pred_check
      _
    $region47: #{tpu_custom_call.1} parent=1 // pred_check_branch
      %236 = sbr.rel (0) target = $region49
    $region48: #{tpu_custom_call.1} parent=1 // pred_region
      %238 = vsyncadd [#allocation5], 0
      %s240 = sshll.u32 [#allocation11], 4
      %s241 = int_to_ptr.vmem [resolvable:$true] %s240
      %s242 = sshll.u32 %s6, 4
      %s243 = int_to_ptr.hbm [resolvable:$true] %s242
      %245 = dma.vmem_to_hbm [thread:$0]  %s241, 128, %s243, [#allocation5]
    $region49: #{tpu_custom_call.1} parent=1 // pred_fallthru
      _
    // Predicated region
    $region50: #{tpu_custom_call.1} parent=1 // pred_check
      _
    $region51: #{tpu_custom_call.1} parent=1 // pred_check_branch
      %247 = sbr.rel (0) target = $region53
    $region52: #{tpu_custom_call.1} parent=1 // pred_region
      %249 = vsyncadd [#allocation13], 0
      %s251 = sshll.u32 [#allocation12], 4
      %s252 = int_to_ptr.vmem [resolvable:$true] %s251
      %s253 = sshll.u32 %s7, 4
      %s254 = int_to_ptr.hbm [resolvable:$true] %s253
      %256 = dma.vmem_to_hbm [thread:$0]  %s252, 128, %s254, [#allocation13]
    $region53: #{tpu_custom_call.1} parent=1 // pred_fallthru
      _
    // Predicated region
    $region54: #{tpu_custom_call.1} parent=1 // pred_check
      _
    $region55: #{tpu_custom_call.1} parent=1 // pred_check_branch
      %258 = sbr.rel (0) target = $region57
    $region56: #{tpu_custom_call.1} parent=1 // pred_region
      %260 = dma.done [#allocation5], 128
    $region57: #{tpu_custom_call.1} parent=1 // pred_fallthru
      _
    // Predicated region
    $region58: #{tpu_custom_call.1} parent=1 // pred_check
      _
    $region59: #{tpu_custom_call.1} parent=1 // pred_check_branch
      %262 = sbr.rel (0) target = $region61
    $region60: #{tpu_custom_call.1} parent=1 // pred_region
      %264 = dma.done [#allocation13], 128
    $region61: #{tpu_custom_call.1} parent=1 // pred_fallthru
      _
    %265 = vsyncpa [#allocation4], 1
    %266 = vsyncpa [#allocation7], 1
    %267 = vsyncpa [#allocation10], 1
    %268 = vsyncpa [#allocation5], 1
    %269 = vsyncpa [#allocation13], 1

// kernel: tpu_custom_call.1
$region0: #{tpu_custom_call.1}
  #allocation0 [shape = 'u32[]', space=smem, size = 0x4, offset = 0x4, fixed_abs, tag = 'smem constant byte address 0x4 - core index']
  #allocation1 [shape = 'u32[72,128]{1,0:T(1,128)}', space=vmem, size = 0x9000, scoped, tag = 'internal scratch']
  #allocation2 [shape = 'f32[8,128]{1,0:T(8,128)}', space=vmem, size = 0x1000, scoped, tag = 'scratch operand']
  %s0 = inlined_call_operand.hbm [shape: f32[8,128], index: 0, kind: input, shape index: {}]
  %s1 = inlined_call_operand.hbm [shape: f32[8,128], index: 1, kind: input, shape index: {}]
  %s2 = inlined_call_operand.hbm [shape: f32[128,128], index: 2, kind: input, shape index: {}]
  %s3 = inlined_call_operand.vmem [shape: f32[1,128], index: 3, kind: input, shape index: {}]
  %s4 = inlined_call_operand.hbm [shape: f32[128,256], index: 4, kind: input, shape index: {}]
  %s5 = inlined_call_operand.vmem [shape: f32[1,256], index: 5, kind: input, shape index: {}]
  %s6 = inlined_call_operand.hbm [shape: f32[8,128], index: 6, kind: output, shape index: {0}]
  %s7 = inlined_call_operand.hbm [shape: f32[8,128], index: 7, kind: output, shape index: {1}]
  %8 = xla_tuple %s6, %s7
  %s9 = sld [smem:[#allocation0]]
  $region62: #{tpu_custom_call.1} parent=0
    _
  %s11 = ssub.s32 1, %s9
  %s12 = scalar_select 0, %s11, %s9
  $region1: #{tpu_custom_call.1} parent=0
    #allocation3 [shape = 'u8[4096]{0}', space=vmem, size = 0x1000, scoped, tag = 'input window, operand 0, single buffered']
    #allocation4 [shape = 's32[1]{0}', space=sflag, size = 0x4, scoped, tag = 'scoped memory for tpu_custom_call.1']
    #allocation5 [shape = 's32[1]{0}', space=sflag, size = 0x4, scoped, tag = 'scoped memory for tpu_custom_call.1']
    #allocation6 [shape = 'u8[4096]{0}', space=vmem, size = 0x1000, scoped, tag = 'input window, operand 1, single buffered']
    #allocation7 [shape = 's32[1]{0}', space=sflag, size = 0x4, scoped, tag = 'scoped memory for tpu_custom_call.1']
    #allocation8 [shape = 'u8[65536]{0}', space=vmem, size = 0x10000, scoped, tag = 'input window, operand 2, single buffered']
    #allocation9 [shape = 'u8[131072]{0}', space=vmem, size = 0x20000, scoped, tag = 'input window, operand 4, single buffered']
    #allocation10 [shape = 's32[1]{0}', space=sflag, size = 0x4, scoped, tag = 'scoped memory for tpu_custom_call.1']
    #allocation11 [shape = 'u8[4096]{0}', space=vmem, size = 0x1000, scoped, tag = 'output window, operand 0, single buffered']
    #allocation12 [shape = 'u8[4096]{0}', space=vmem, size = 0x1000, scoped, tag = 'output window, operand 1, single buffered']
    #allocation13 [shape = 's32[1]{0}', space=sflag, size = 0x4, scoped, tag = 'scoped memory for tpu_custom_call.1']
    %13 = vsyncpa [#allocation4], 0
    %14 = vsyncpa [#allocation7], 0
    %15 = vsyncpa [#allocation10], 0
    %16 = vsyncpa [#allocation5], 0
    %17 = vsyncpa [#allocation13], 0
    // Predicated region
    $region2: #{tpu_custom_call.1} parent=1 // pred_check
      _
    $region3: #{tpu_custom_call.1} parent=1 // pred_check_branch
      %19 = sbr.rel (0) target = $region5
    $region4: #{tpu_custom_call.1} parent=1 // pred_region
      %21 = vsyncadd [#allocation4], 0
      %s23 = sshll.u32 %s0, 4
      %s24 = int_to_ptr.hbm [resolvable:$true] %s23
      %s25 = sshll.u32 [#allocation3], 4
      %s26 = int_to_ptr.vmem [resolvable:$true] %s25
      %28 = dma.hbm_to_vmem [thread:$0]  %s24, 128, %s26, [#allocation4]
    $region5: #{tpu_custom_call.1} parent=1 // pred_fallthru
      _
    // Predicated region
    $region6: #{tpu_custom_call.1} parent=1 // pred_check
      _
    $region7: #{tpu_custom_call.1} parent=1 // pred_check_branch
      %30 = sbr.rel (0) target = $region9
    $region8: #{tpu_custom_call.1} parent=1 // pred_region
      %32 = vsyncadd [#allocation7], 0
      %s34 = sshll.u32 %s1, 4
      %s35 = int_to_ptr.hbm [resolvable:$true] %s34
      %s36 = sshll.u32 [#allocation6], 4
      %s37 = int_to_ptr.vmem [resolvable:$true] %s36
      %39 = dma.hbm_to_vmem [thread:$0]  %s35, 128, %s37, [#allocation7]
    $region9: #{tpu_custom_call.1} parent=1 // pred_fallthru
      _
    // Predicated region
    $region10: #{tpu_custom_call.1} parent=1 // pred_check
      _
    $region11: #{tpu_custom_call.1} parent=1 // pred_check_branch
      %41 = sbr.rel (0) target = $region13
    $region12: #{tpu_custom_call.1} parent=1 // pred_region
      %43 = vsyncadd [#allocation7], 0
      %s44 = sshll.u32 %s2, 4
      %s45 = int_to_ptr.hbm [resolvable:$true] %s44
      %s46 = sshll.u32 [#allocation8], 4
      %s47 = int_to_ptr.vmem [resolvable:$true] %s46
      %52 = dma.hbm_to_vmem [thread:$0]  %s45, 2048, %s47, [#allocation7], 128, 128, 8
    $region13: #{tpu_custom_call.1} parent=1 // pred_fallthru
      _
    // Predicated region
    $region14: #{tpu_custom_call.1} parent=1 // pred_check
      _
    $region15: #{tpu_custom_call.1} parent=1 // pred_check_branch
      %54 = sbr.rel (0) target = $region17
    $region16: #{tpu_custom_call.1} parent=1 // pred_region
      _
    $region17: #{tpu_custom_call.1} parent=1 // pred_fallthru
      _
    // Predicated region
    $region18: #{tpu_custom_call.1} parent=1 // pred_check
      _
    $region19: #{tpu_custom_call.1} parent=1 // pred_check_branch
      %56 = sbr.rel (0) target = $region21
    $region20: #{tpu_custom_call.1} parent=1 // pred_region
      %58 = vsyncadd [#allocation10], 0
      %s59 = sshll.u32 %s4, 4
      %s60 = int_to_ptr.hbm [resolvable:$true] %s59
      %s61 = sshll.u32 [#allocation9], 4
      %s62 = int_to_ptr.vmem [resolvable:$true] %s61
      %67 = dma.hbm_to_vmem [thread:$0]  %s60, 4096, %s62, [#allocation10], 256, 256, 16
    $region21: #{tpu_custom_call.1} parent=1 // pred_fallthru
      _
    // Predicated region
    $region22: #{tpu_custom_call.1} parent=1 // pred_check
      _
    $region23: #{tpu_custom_call.1} parent=1 // pred_check_branch
      %69 = sbr.rel (0) target = $region25
    $region24: #{tpu_custom_call.1} parent=1 // pred_region
      _
    $region25: #{tpu_custom_call.1} parent=1 // pred_fallthru
      _
    // Predicated region
    $region26: #{tpu_custom_call.1} parent=1 // pred_check
      _
    $region27: #{tpu_custom_call.1} parent=1 // pred_check_branch
      %71 = sbr.rel (0) target = $region29
    $region28: #{tpu_custom_call.1} parent=1 // pred_region
      %73 = dma.done [#allocation4], 128
    $region29: #{tpu_custom_call.1} parent=1 // pred_fallthru
      _
    // Predicated region
    $region30: #{tpu_custom_call.1} parent=1 // pred_check
      _
    $region31: #{tpu_custom_call.1} parent=1 // pred_check_branch
      %75 = sbr.rel (0) target = $region33
    $region32: #{tpu_custom_call.1} parent=1 // pred_region
      %77 = dma.done [#allocation7], 128
    $region33: #{tpu_custom_call.1} parent=1 // pred_fallthru
      _
    // Predicated region
    $region34: #{tpu_custom_call.1} parent=1 // pred_check
      _
    $region35: #{tpu_custom_call.1} parent=1 // pred_check_branch
      %79 = sbr.rel (0) target = $region37
    $region36: #{tpu_custom_call.1} parent=1 // pred_region
      %81 = dma.done [#allocation7], 2048
    $region37: #{tpu_custom_call.1} parent=1 // pred_fallthru
      _
    // Predicated region
    $region38: #{tpu_custom_call.1} parent=1 // pred_check
      _
    $region39: #{tpu_custom_call.1} parent=1 // pred_check_branch
      %83 = sbr.rel (0) target = $region41
    $region40: #{tpu_custom_call.1} parent=1 // pred_region
      %85 = dma.done [#allocation10], 4096
    $region41: #{tpu_custom_call.1} parent=1 // pred_fallthru
      _
    %p86 = scmp.eq.s32.totalorder 0, 0
    // Predicated region
    $region42: #{tpu_custom_call.1} parent=1 // pred_check
      %p87 = pneg %p86
    $region43: #{tpu_custom_call.1} parent=1 // pred_check_branch
      %89 = sbr.rel (%p87) target = $region45
    $region44: #{tpu_custom_call.1} parent=1 // pred_region
      %v90 = vld [vmem:[#allocation6] sm:$0xff]
      %v91 = vld [vmem:[#allocation8] sm:$0xff]
      %v92 = vld [vmem:[#allocation8 + $0x8] sm:$0xff]
      %v93 = vld [vmem:[#allocation8 + $0x10] sm:$0xff]
      %v94 = vld [vmem:[#allocation8 + $0x18] sm:$0xff]
      %v95 = vld [vmem:[#allocation8 + $0x20] sm:$0xff]
      %v96 = vld [vmem:[#allocation8 + $0x28] sm:$0xff]
      %v97 = vld [vmem:[#allocation8 + $0x30] sm:$0xff]
      %v98 = vld [vmem:[#allocation8 + $0x38] sm:$0xff]
      %v99 = vld [vmem:[#allocation8 + $0x40] sm:$0xff]
      %v100 = vld [vmem:[#allocation8 + $0x48] sm:$0xff]
      %v101 = vld [vmem:[#allocation8 + $0x50] sm:$0xff]
      %v102 = vld [vmem:[#allocation8 + $0x58] sm:$0xff]
      %v103 = vld [vmem:[#allocation8 + $0x60] sm:$0xff]
      %v104 = vld [vmem:[#allocation8 + $0x68] sm:$0xff]
      %v105 = vld [vmem:[#allocation8 + $0x70] sm:$0xff]
      %v106 = vld [vmem:[#allocation8 + $0x78] sm:$0xff]
      %v107 = vld [vmem:[%s3] sm:$0x1]
      %v109 = vperm.slane %v107, 0
      %111 = vmatpush.msra.mxu0 %v106
      %112 = vmatpush.msra.mxu0 %v105
      %113 = vmatpush.msra.mxu0 %v104
      %114 = vmatpush.msra.mxu0 %v103
      %115 = vmatpush.msra.mxu0 %v102
      %116 = vmatpush.msra.mxu0 %v101
      %117 = vmatpush.msra.mxu0 %v100
      %118 = vmatpush.msra.mxu0 %v99
      %119 = vmatpush.msra.mxu0 %v98
      %120 = vmatpush.msra.mxu0 %v97
      %121 = vmatpush.msra.mxu0 %v96
      %122 = vmatpush.msra.mxu0 %v95
      %123 = vmatpush.msra.mxu0 %v94
      %124 = vmatpush.msra.mxu0 %v93
      %125 = vmatpush.msra.mxu0 %v92
      %126 = vmatpush.msra.mxu0 %v91
      %127 = vmatmul.f32.gmra.mxu0 %v90
      %v128 = vpop.f32.mrf.mxu0
      %v129 = vadd.f32 %v109, %v128
      %130 = vdwg.mxu0
      %v131 = vmax.f32 %v129, 0.0
      %132 = vst [vmem:[#allocation2] sm:$0xff] %v131
    $region45: #{tpu_custom_call.1} parent=1 // pred_fallthru
      _
    %v133 = vld [vmem:[#allocation2] sm:$0xff]
    %v134 = vld [vmem:[#allocation9] sm:$0xff]
    %v135 = vld [vmem:[#allocation9 + $0x8] sm:$0xff]
    %v136 = vld [vmem:[#allocation9 + $0x10] sm:$0xff]
    %v137 = vld [vmem:[#allocation9 + $0x18] sm:$0xff]
    %v138 = vld [vmem:[#allocation9 + $0x20] sm:$0xff]
    %v139 = vld [vmem:[#allocation9 + $0x28] sm:$0xff]
    %v140 = vld [vmem:[#allocation9 + $0x30] sm:$0xff]
    %v141 = vld [vmem:[#allocation9 + $0x38] sm:$0xff]
    %v142 = vld [vmem:[#allocation9 + $0x40] sm:$0xff]
    %v143 = vld [vmem:[#allocation9 + $0x48] sm:$0xff]
    %v144 = vld [vmem:[#allocation9 + $0x50] sm:$0xff]
    %v145 = vld [vmem:[#allocation9 + $0x58] sm:$0xff]
    %v146 = vld [vmem:[#allocation9 + $0x60] sm:$0xff]
    %v147 = vld [vmem:[#allocation9 + $0x68] sm:$0xff]
    %v148 = vld [vmem:[#allocation9 + $0x70] sm:$0xff]
    %v149 = vld [vmem:[#allocation9 + $0x78] sm:$0xff]
    %v150 = vld [vmem:[#allocation9 + $0x80] sm:$0xff]
    %v151 = vld [vmem:[#allocation9 + $0x88] sm:$0xff]
    %v152 = vld [vmem:[#allocation9 + $0x90] sm:$0xff]
    %v153 = vld [vmem:[#allocation9 + $0x98] sm:$0xff]
    %v154 = vld [vmem:[#allocation9 + $0xa0] sm:$0xff]
    %v155 = vld [vmem:[#allocation9 + $0xa8] sm:$0xff]
    %v156 = vld [vmem:[#allocation9 + $0xb0] sm:$0xff]
    %v157 = vld [vmem:[#allocation9 + $0xb8] sm:$0xff]
    %v158 = vld [vmem:[#allocation9 + $0xc0] sm:$0xff]
    %v159 = vld [vmem:[#allocation9 + $0xc8] sm:$0xff]
    %v160 = vld [vmem:[#allocation9 + $0xd0] sm:$0xff]
    %v161 = vld [vmem:[#allocation9 + $0xd8] sm:$0xff]
    %v162 = vld [vmem:[#allocation9 + $0xe0] sm:$0xff]
    %v163 = vld [vmem:[#allocation9 + $0xe8] sm:$0xff]
    %v164 = vld [vmem:[#allocation9 + $0xf0] sm:$0xff]
    %v165 = vld [vmem:[#allocation9 + $0xf8] sm:$0xff]
    %v166 = vld [vmem:[%s5] sm:$0x3]
    %v168 = vperm.slane %v166, 0
    %v169 = vperm.slane %v166, 1
    %172 = vmatpush.msra.mxu0 %v164
    %173 = vmatpush.msra.mxu0 %v162
    %174 = vmatpush.msra.mxu0 %v160
    %175 = vmatpush.msra.mxu0 %v158
    %176 = vmatpush.msra.mxu0 %v156
    %177 = vmatpush.msra.mxu0 %v154
    %178 = vmatpush.msra.mxu0 %v152
    %179 = vmatpush.msra.mxu0 %v150
    %180 = vmatpush.msra.mxu0 %v148
    %181 = vmatpush.msra.mxu0 %v146
    %182 = vmatpush.msra.mxu0 %v144
    %183 = vmatpush.msra.mxu0 %v142
    %184 = vmatpush.msra.mxu0 %v140
    %185 = vmatpush.msra.mxu0 %v138
    %186 = vmatpush.msra.mxu0 %v136
    %187 = vmatpush.msra.mxu0 %v134
    %188 = vmatmul.f32.gmra.mxu0 %v133
    %v189 = vpop.f32.mrf.mxu0
    %v190 = vadd.f32 %v168, %v189
    %191 = vdwg.mxu0
    %192 = vmatpush.msra.mxu0 %v165
    %193 = vmatpush.msra.mxu0 %v163
    %194 = vmatpush.msra.mxu0 %v161
    %195 = vmatpush.msra.mxu0 %v159
    %196 = vmatpush.msra.mxu0 %v157
    %197 = vmatpush.msra.mxu0 %v155
    %198 = vmatpush.msra.mxu0 %v153
    %199 = vmatpush.msra.mxu0 %v151
    %200 = vmatpush.msra.mxu0 %v149
    %201 = vmatpush.msra.mxu0 %v147
    %202 = vmatpush.msra.mxu0 %v145
    %203 = vmatpush.msra.mxu0 %v143
    %204 = vmatpush.msra.mxu0 %v141
    %205 = vmatpush.msra.mxu0 %v139
    %206 = vmatpush.msra.mxu0 %v137
    %207 = vmatpush.msra.mxu0 %v135
    %208 = vmatmul.f32.gmra.mxu0 %v133
    %v209 = vpop.f32.mrf.mxu0
    %v210 = vadd.f32 %v169, %v209
    %211 = vdwg.mxu0
    %v212 = vld [vmem:[#allocation3] sm:$0xff]
    %v213 = vxor.u32 %v190, 2147483648
    %v214 = vmul.f32 %v213, 1.442695
    %v215 = vpow.pop %v214
    %v216 = vadd.f32 %v215, 1.0
    %v217 = vrcp.pop %v216
    %v218 = vmul.f32 %v216, %v217
    %v219 = vsub.f32 1.0, %v218
    %v220 = vmul.f32 %v217, %v219
    %v221 = vadd.f32 %v217, %v220
    %vm222 = vweird.f32 %v216
    %vm223 = vweird.f32 %v217
    %vm224 = vmor %vm222, %vm223
    %v225 = vsel %vm224, %v217, %v221
    %v226 = vand.u32 2147483647, %v216
    %vm227 = vcmp.eq.f32.partialorder %v226, 8.507059e+37
    %v228 = vand.u32 %v216, 2147483648
    %v229 = vor.u32 1.1754944e-38, %v228
    %v230 = vsel %vm227, %v229, %v225
    %v231 = vmul.f32 1.0, %v230
    %v232 = vmul.f32 %v212, %v231
    %233 = vst [vmem:[#allocation11] sm:$0xff] %v232
    %234 = vst [vmem:[#allocation12] sm:$0xff] %v210
    // Predicated region
    $region46: #{tpu_custom_call.1} parent=1 // pred_check
      _
    $region47: #{tpu_custom_call.1} parent=1 // pred_check_branch
      %236 = sbr.rel (0) target = $region49
    $region48: #{tpu_custom_call.1} parent=1 // pred_region
      %238 = vsyncadd [#allocation5], 0
      %s240 = sshll.u32 [#allocation11], 4
      %s241 = int_to_ptr.vmem [resolvable:$true] %s240
      %s242 = sshll.u32 %s6, 4
      %s243 = int_to_ptr.hbm [resolvable:$true] %s242
      %245 = dma.vmem_to_hbm [thread:$0]  %s241, 128, %s243, [#allocation5]
    $region49: #{tpu_custom_call.1} parent=1 // pred_fallthru
      _
    // Predicated region
    $region50: #{tpu_custom_call.1} parent=1 // pred_check
      _
    $region51: #{tpu_custom_call.1} parent=1 // pred_check_branch
      %247 = sbr.rel (0) target = $region53
    $region52: #{tpu_custom_call.1} parent=1 // pred_region
      %249 = vsyncadd [#allocation13], 0
      %s251 = sshll.u32 [#allocation12], 4
      %s252 = int_to_ptr.vmem [resolvable:$true] %s251
      %s253 = sshll.u32 %s7, 4
      %s254 = int_to_ptr.hbm [resolvable:$true] %s253
      %256 = dma.vmem_to_hbm [thread:$0]  %s252, 128, %s254, [#allocation13]
    $region53: #{tpu_custom_call.1} parent=1 // pred_fallthru
      _
    // Predicated region
    $region54: #{tpu_custom_call.1} parent=1 // pred_check
      _
    $region55: #{tpu_custom_call.1} parent=1 // pred_check_branch
      %258 = sbr.rel (0) target = $region57
    $region56: #{tpu_custom_call.1} parent=1 // pred_region
      %260 = dma.done [#allocation5], 128
    $region57: #{tpu_custom_call.1} parent=1 // pred_fallthru
      _
    // Predicated region
    $region58: #{tpu_custom_call.1} parent=1 // pred_check
      _
    $region59: #{tpu_custom_call.1} parent=1 // pred_check_branch
      %262 = sbr.rel (0) target = $region61
    $region60: #{tpu_custom_call.1} parent=1 // pred_region
      %264 = dma.done [#allocation13], 128
    $region61: #{tpu_custom_call.1} parent=1 // pred_fallthru
      _
    %265 = vsyncpa [#allocation4], 1
    %266 = vsyncpa [#allocation7], 1
    %267 = vsyncpa [#allocation10], 1
    %268 = vsyncpa [#allocation5], 1
    %269 = vsyncpa [#allocation13], 1

</llo_original>
